<compile_context>
chip_gen: v5e
topology: v5e:2x2
jax: 0.10.0
libtpu: 0.0.40
codegen_flags: <defaults>
</compile_context>

<pallas_src>
import math

import jax
import jax.numpy as jnp
from jax.experimental import pallas as pl
from jax.experimental.pallas import tpu as pltpu

_MIB = 1024 * 1024


def _vmem_capacity_bytes():
    # Generation-aware physical VMEM (v5e/v6e: 128 MiB, v7x: 64 MiB per TensorCore).
    try:
        return int(pltpu.get_tpu_info().vmem_capacity_bytes)
    except Exception:
        return 64 * _MIB  # conservative (v7x-sized) fallback


def _make_metapool_kernel(*, tile, rows, steps, nb, partitions, inv_n, ragged):
    """All args are Python statics captured in the closure.

    tile       : rows per streamed x slab
    rows       : true number of (packed) rows in x_in
    steps      : grid steps along the reduction axis per partition
    nb         : number of real row-blocks = cdiv(rows, tile)
    partitions : leading "parallel" grid extent
    inv_n      : 1 / (true node count N)
    ragged     : rows % tile != 0
    """
    # First global block index that needs element masking: the ragged final block and/or
    # any fully-padded trailing block (when partitions * steps > nb).
    first_masked = (nb - 1) if ragged else nb
    need_mask = first_masked < partitions * steps

    def kernel(x_ref, w_ref, o_ref, acc_ref):
        p = pl.program_id(0)          # megacore-parallel partition index
        i = pl.program_id(1)          # reduction-step index within the partition
        gb = p * steps + i            # global (unclamped) row-block index

        @pl.when(i == 0)
        def _init():
            acc_ref[...] = jnp.zeros_like(acc_ref)

        x = x_ref[...].astype(jnp.float32)                       # (tile, width)

        if need_mask:
            @pl.when(gb < first_masked)
            def _plain():
                acc_ref[...] += jnp.sum(x, axis=0, keepdims=True)

            @pl.when(gb >= first_masked)
            def _masked():
                # (tile, 1) iota vs. scalar bound; garbage padding rows -> 0.
                row_ids = gb * tile + jax.lax.broadcasted_iota(
                    jnp.int32, (tile, 1), 0)
                xm = jnp.where(row_ids < rows, x, 0.0)
                acc_ref[...] += jnp.sum(xm, axis=0, keepdims=True)
        else:
            acc_ref[...] += jnp.sum(x, axis=0, keepdims=True)

        @pl.when(i == steps - 1)
        def _finalize():
            # Per-partition partial result: (partial_sum / N) @ W.  Partitions are summed
            # in the wrapper (matmul is linear, so this equals mean(x) @ W).
            pooled = (acc_ref[...] * inv_n).astype(w_ref.dtype)   # (1, width)
            res = jnp.dot(pooled, w_ref[...],
                          preferred_element_type=jnp.float32)     # (1, d)
            o_ref[...] = res[None].astype(o_ref.dtype)            # (1, 1, d)

    return kernel


def meta_pool(x, weight, *, slab_bytes=4 * _MIB, partitions=2):
    """MetaPool forward (batch=None): x (N, D), weight (D, D) -> (1, D)."""
    n, d = x.shape
    assert weight.shape == (d, d)
    assert n > 0

    itemsize = jnp.dtype(x.dtype).itemsize
    w_itemsize = jnp.dtype(weight.dtype).itemsize
    inv_n = 1.0 / float(n)

    # ---- lane-dense packing for D < 128 (e.g. D=32 f32 -> 4 nodes per 128-lane row).
    # Extended to N % fold != 0: kernel consumes floor(N/fold) packed rows; the leftover
    # (< fold) nodes are added wrapper-side (exact, since matmul is linear).
    if d < 128 and 128 % d == 0 and n >= (128 // d):
        fold = 128 // d
    else:
        fold = 1
    rows = n // fold
    width = d * fold
    n_tail = n - rows * fold

    if fold > 1:
        x_head = x if n_tail == 0 else x[: rows * fold]
        # TODO(synk): verify in the surrounding HLO that this reshape (and the prefix
        # slice for ragged N) does not materialize an HBM relayout copy of x; if it does,
        # fuse the packing into x's producer or request a packed input layout.
        x_in = x_head.reshape(rows, width)
        w_in = jnp.concatenate([weight] * fold, axis=0)      # (width, d) fold-stacked W
    else:
        x_in = x
        w_in = weight

    # ---- tile selection: byte-budgeted slab, rounded to the dtype-native sublane count.
    sub = max(8, 32 // itemsize)                  # 8 f32 / 16 bf16 / 32 int8-fp8
    bytes_per_row = width * itemsize
    budget_rows = max(sub, (slab_bytes // bytes_per_row) // sub * sub)
    if rows <= budget_rows:
        tile = rows                               # full first dim -> no (8,128) constraint
    else:
        tile = budget_rows
    nb = pl.cdiv(rows, tile)                      # number of real row-blocks
    ragged = (rows % tile) != 0

    # ---- shard the node reduction across (up to) two megacore partitions.
    parts = max(1, min(partitions, nb))
    steps = pl.cdiv(nb, parts)
    grid = (parts, steps)

    kernel = _make_metapool_kernel(
        tile=tile, rows=rows, steps=steps, nb=nb, partitions=parts,
        inv_n=inv_n, ragged=ragged)

    def x_index_map(p, i):
        # Clamp so fully-padded trailing steps re-read the last real block (their
        # contribution is masked to zero in-kernel) instead of issuing an OOB DMA.
        return (jnp.minimum(p * steps + i, nb - 1), 0)

    # ---- VMEM budgeting (v7x has half the VMEM of v5e/v6e; v5e scoped default is 16 MiB).
    footprint = (2 * tile * width * itemsize      # double-buffered x slabs
                 + 2 * width * d * w_itemsize     # resident weight
                 + width * 4                      # f32 accumulator scratch
                 + parts * d * itemsize)          # output
    vmem_cap = _vmem_capacity_bytes()
    vmem_limit = int(min(vmem_cap - 8 * _MIB, max(32 * _MIB, footprint + 8 * _MIB)))

    cost = pl.CostEstimate(
        flops=2 * rows * width + 2 * parts * width * d,
        transcendentals=0,
        bytes_accessed=n * d * itemsize + width * d * w_itemsize + parts * d * itemsize,
    )

    partial = pl.pallas_call(
        kernel,
        out_shape=jax.ShapeDtypeStruct((parts, 1, d), x.dtype),
        grid_spec=pltpu.PrefetchScalarGridSpec(
            num_scalar_prefetch=0,
            grid=grid,
            in_specs=[
                pl.BlockSpec((tile, width), x_index_map),         # streamed x slabs
                pl.BlockSpec((width, d), lambda p, i: (0, 0)),    # VMEM-resident weight
            ],
            out_specs=pl.BlockSpec((1, 1, d), lambda p, i: (p, 0, 0)),
            scratch_shapes=[pltpu.VMEM((1, width), jnp.float32)],
        ),
        compiler_params=pltpu.CompilerParams(
            dimension_semantics=("parallel", "arbitrary"),
            vmem_limit_bytes=vmem_limit,
        ),
        cost_estimate=cost,
    )(x_in, w_in)

    graph = jnp.sum(partial.astype(jnp.float32), axis=0)          # (1, d)

    if n_tail > 0:
        tail = x[rows * fold:]                                    # (< fold, d) leftover
        tail_pooled = (jnp.sum(tail.astype(jnp.float32), axis=0, keepdims=True)
                       * inv_n).astype(weight.dtype)
        graph = graph + jnp.dot(tail_pooled, weight,
                                preferred_element_type=jnp.float32)

    return graph.astype(x.dtype)


def glorot_init(key, shape):
    # glorot (xavier uniform): U(-a, a), a = sqrt(6 / (fan_in + fan_out))
    fan_in, fan_out = shape
    a = math.sqrt(6.0 / (fan_in + fan_out))
    return jax.random.uniform(key, shape, dtype=jnp.float32, minval=-a, maxval=a)


if __name__ == "__main__":
    emb_dim = 32

    key = jax.random.PRNGKey(0)
    kx, kw, kx2, kx3 = jax.random.split(key, 4)
    weight = glorot_init(kw, (emb_dim, emb_dim))

    def ref(xv, wv):
        return jnp.matmul(jnp.mean(xv.astype(jnp.float32), axis=0, keepdims=True), wv)

    # Case 1: original demo shape (N=8, D=32): packed lane-dense path, single tile.
    x_small = jax.random.normal(kx, (8, emb_dim), dtype=jnp.float32)
    out_small = jax.block_until_ready(meta_pool(x_small, weight))
    assert out_small.shape == (1, emb_dim)
    assert jnp.allclose(out_small, ref(x_small, weight), atol=1e-5, rtol=1e-5)

    # Case 2: ragged N (1037 % 4 != 0): packed path + wrapper-side tail add.  The small
    # slab override forces multi-block streaming, 2 megacore partitions, a ragged final
    # block, and one fully-padded (masked, index-clamped) trailing grid step.
    x_rag = jax.random.normal(kx2, (1037, emb_dim), dtype=jnp.float32)
    out_rag = jax.block_until_ready(meta_pool(x_rag, weight, slab_bytes=64 * 1024))
    assert jnp.allclose(out_rag, ref(x_rag, weight), atol=1e-4, rtol=1e-4)

    # Case 3: exact multi-block packed path (no ragged block, no padded steps), 2 parts.
    x_mid = jax.random.normal(kx3, (4096, emb_dim), dtype=jnp.float32)
    out_mid = jax.block_until_ready(meta_pool(x_mid, weight, slab_bytes=128 * 1024))
    assert jnp.allclose(out_mid, ref(x_mid, weight), atol=1e-4, rtol=1e-4)

    # Case 4: fold=1 path (D=128) with a full-first-dim, non-multiple-of-8 tile.
    d2 = 128
    kw2, kx4 = jax.random.split(kx, 2)
    w2 = glorot_init(kw2, (d2, d2))
    x_d128 = jax.random.normal(kx4, (37, d2), dtype=jnp.float32)
    out_d128 = jax.block_until_ready(meta_pool(x_d128, w2))
    assert jnp.allclose(out_d128, ref(x_d128, w2), atol=1e-4, rtol=1e-4)

    # TODO(synk): the `batch is not None` branch (global_mean_pool segment-mean) is not
    # implemented; it needs PrefetchScalarGridSpec scalar-prefetched segment offsets
    # driving the x index_map (scalar-prefetch gather), not an in-kernel gather.
    print("KERNEL_OK")
</pallas_src>

<mosaic_0001>
module attributes {stable_mosaic.version = 11 : i64} {
  func.func @kernel(%arg0: i32, %arg1: i32, %arg2: memref<2x128xf32, #tpu.memory_space<vmem>>, %arg3: memref<128x32xf32, #tpu.memory_space<vmem>>, %arg4: memref<1x1x32xf32, #tpu.memory_space<vmem>>, %arg5: memref<1x128xf32, #tpu.memory_space<vmem>>) attributes {dimension_semantics = [#tpu.dimension_semantics<parallel>, #tpu.dimension_semantics<arbitrary>], iteration_bounds = array<i64: 1, 1>, scalar_prefetch = 0 : i64, scratch_operands = 1 : i64, tpu.core_type = #tpu.core_type<tc>, window_params = [{transform_indices = @transform_0, window_bounds = array<i64: 2, 128>}, {pipeline_mode = #tpu.pipeline_mode<synchronous>, transform_indices = @transform_1, window_bounds = array<i64: 128, 32>}, {transform_indices = @transform_2, window_bounds = array<i64: 1, 1, 32>}]} {
    %c0_i32 = arith.constant 0 : i32
    %0 = arith.cmpi eq, %arg1, %c0_i32 : i32
    %1 = arith.extui %0 : i1 to i32
    %c0_i32_0 = arith.constant 0 : i32
    %2 = arith.cmpi ne, %1, %c0_i32_0 : i32
    scf.if %2 {
      %cst_8 = arith.constant 0.000000e+00 : f32
      %12 = vector.broadcast %cst_8 : f32 to vector<1x128xf32>
      %c0_9 = arith.constant 0 : index
      %c0_10 = arith.constant 0 : index
      %13 = vector.load %arg5[%c0_9, %c0_10] : memref<1x128xf32, #tpu.memory_space<vmem>>, vector<1x128xf32>
      tpu.vector_store %arg5[%c0_9, %c0_10], %12 {strides = array<i32>} : memref<1x128xf32, #tpu.memory_space<vmem>>, vector<1x128xf32>,
    } else {
    }
    %c0 = arith.constant 0 : index
    %c0_1 = arith.constant 0 : index
    %3 = vector.load %arg2[%c0, %c0_1] : memref<2x128xf32, #tpu.memory_space<vmem>>, vector<2x128xf32>
    %c0_2 = arith.constant 0 : index
    %c0_3 = arith.constant 0 : index
    %4 = vector.load %arg5[%c0_2, %c0_3] : memref<1x128xf32, #tpu.memory_space<vmem>>, vector<1x128xf32>
    %cst = arith.constant dense<0.000000e+00> : vector<128xf32>
    %5 = vector.multi_reduction <add>, %3, %cst [0] : vector<2x128xf32> to vector<128xf32>
    %6 = vector.shape_cast %5 : vector<128xf32> to vector<1x128xf32>
    %7 = arith.addf %4, %6 : vector<1x128xf32>
    %c0_4 = arith.constant 0 : index
    %c0_5 = arith.constant 0 : index
    %8 = vector.load %arg5[%c0_4, %c0_5] : memref<1x128xf32, #tpu.memory_space<vmem>>, vector<1x128xf32>
    tpu.vector_store %arg5[%c0_4, %c0_5], %7 {strides = array<i32>} : memref<1x128xf32, #tpu.memory_space<vmem>>, vector<1x128xf32>,
    %c0_i32_6 = arith.constant 0 : i32
    %9 = arith.cmpi eq, %arg1, %c0_i32_6 : i32
    %10 = arith.extui %9 : i1 to i32
    %c0_i32_7 = arith.constant 0 : i32
    %11 = arith.cmpi ne, %10, %c0_i32_7 : i32
    scf.if %11 {
      %c0_8 = arith.constant 0 : index
      %c0_9 = arith.constant 0 : index
      %12 = vector.load %arg5[%c0_8, %c0_9] : memref<1x128xf32, #tpu.memory_space<vmem>>, vector<1x128xf32>
      %cst_10 = arith.constant 1.250000e-01 : f32
      %13 = vector.broadcast %cst_10 : f32 to vector<1x128xf32>
      %14 = arith.mulf %12, %13 : vector<1x128xf32>
      %c0_11 = arith.constant 0 : index
      %c0_12 = arith.constant 0 : index
      %15 = vector.load %arg3[%c0_11, %c0_12] : memref<128x32xf32, #tpu.memory_space<vmem>>, vector<128x32xf32>
      %cst_13 = arith.constant dense<0.000000e+00> : vector<1x32xf32>
      %16 = tpu.matmul %14, %15, %cst_13 {dimension_numbers = #tpu.dot_dimension_numbers<[1], [0], [0], [1], [0, 0, 1, 1], [], []>} : vector<1x128xf32>, vector<128x32xf32>, vector<1x32xf32> -> vector<1x32xf32>
      %17 = vector.shape_cast %16 : vector<1x32xf32> to vector<1x1x32xf32>
      %c0_14 = arith.constant 0 : index
      %c0_15 = arith.constant 0 : index
      %c0_16 = arith.constant 0 : index
      %18 = vector.load %arg4[%c0_14, %c0_15, %c0_16] : memref<1x1x32xf32, #tpu.memory_space<vmem>>, vector<1x1x32xf32>
      tpu.vector_store %arg4[%c0_14, %c0_15, %c0_16], %17 {strides = array<i32>} : memref<1x1x32xf32, #tpu.memory_space<vmem>>, vector<1x1x32xf32>,
    } else {
    }
    return
  }
  func.func @transform_0(%arg0: i32, %arg1: i32) -> (i32, i32) {
    %c1_i32 = arith.constant 1 : i32
    %0 = arith.muli %arg0, %c1_i32 : i32
    %1 = arith.addi %0, %arg1 : i32
    %c0_i32 = arith.constant 0 : i32
    %2 = arith.minsi %1, %c0_i32 : i32
    %c0_i32_0 = arith.constant 0 : i32
    %c0_i32_1 = arith.constant 0 : i32
    return %2, %c0_i32_0 : i32, i32
  }
  func.func @transform_1(%arg0: i32, %arg1: i32) -> (i32, i32) {
    %c0_i32 = arith.constant 0 : i32
    %c0_i32_0 = arith.constant 0 : i32
    %c0_i32_1 = arith.constant 0 : i32
    return %c0_i32, %c0_i32_0 : i32, i32
  }
  func.func @transform_2(%arg0: i32, %arg1: i32) -> (i32, i32, i32) {
    %c0_i32 = arith.constant 0 : i32
    %c0_i32_0 = arith.constant 0 : i32
    %c0_i32_1 = arith.constant 0 : i32
    return %arg0, %c0_i32, %c0_i32_0 : i32, i32, i32
  }
}

</mosaic_0001>

<llo_original>
// kernel: tpu_custom_call.1
$region0: #{tpu_custom_call.1}
  #allocation0 [shape = 'u32[]', space=smem, size = 0x4, offset = 0x4, fixed_abs, tag = 'smem constant byte address 0x4 - core index']
  #allocation1 [shape = 'u32[72,128]{1,0:T(1,128)}', space=vmem, size = 0x9000, scoped, tag = 'internal scratch']
  #allocation2 [shape = 'f32[1,128]{1,0:T(1,128)}', space=vmem, size = 0x200, scoped, tag = 'scratch operand']
  %s0 = inlined_call_operand.vmem [shape: f32[2,128], index: 0, kind: input, shape index: {}]
  %s1 = inlined_call_operand.vmem [shape: f32[128,32], index: 1, kind: input, shape index: {}]
  %s2 = inlined_call_operand.hbm [shape: f32[1,1,32], index: 2, kind: output, shape index: {}]
  %s3 = sld [smem:[#allocation0]]
  $region26: #{tpu_custom_call.1} parent=0
    _
  %s5 = ssub.s32 1, %s3
  %s6 = scalar_select 0, %s5, %s3
  $region1: #{tpu_custom_call.1} parent=0
    #allocation3 [shape = 'u8[512]{0}', space=vmem, size = 0x400, scoped, tag = 'output window, operand 0, single buffered']
    #allocation4 [shape = 's32[1]{0}', space=sflag, size = 0x4, scoped, tag = 'scoped memory for tpu_custom_call.1']
    %7 = vsyncpa [#allocation4], 0
    // Predicated region
    $region2: #{tpu_custom_call.1} parent=1 // pred_check
      _
    $region3: #{tpu_custom_call.1} parent=1 // pred_check_branch
      %9 = sbr.rel (0) target = $region5
    $region4: #{tpu_custom_call.1} parent=1 // pred_region
      %s10 = sadd.s32 0, 0
      %p11 = scmp.lt.s32.totalorder %s10, 0
      %s12 = scalar_select %p11, %s10, 0
      %p13 = scmp.lt.s32.totalorder %s12, 0
      %s14 = scalar_select %p13, %s12, 0
      %s15 = smul.addr %s14, 2
      %s16 = scalar_lea.vmem %s0, %s15
      %s17 = sadd.s32 0, 0
      %p18 = scmp.lt.s32.totalorder %s17, 0
      %s19 = scalar_select %p18, %s17, 0
    $region5: #{tpu_custom_call.1} parent=1 // pred_fallthru
      _
    // Predicated region
    $region6: #{tpu_custom_call.1} parent=1 // pred_check
      _
    $region7: #{tpu_custom_call.1} parent=1 // pred_check_branch
      %21 = sbr.rel (0) target = $region9
    $region8: #{tpu_custom_call.1} parent=1 // pred_region
      _
    $region9: #{tpu_custom_call.1} parent=1 // pred_fallthru
      _
    %s22 = sadd.s32 0, 0
    %p23 = scmp.lt.s32.totalorder %s22, 0
    %s24 = scalar_select %p23, %s22, 0
    %p25 = scmp.lt.s32.totalorder %s24, 0
    %s26 = scalar_select %p25, %s24, 0
    %s27 = smul.addr %s26, 2
    %s28 = scalar_lea.vmem %s0, %s27
    %s29 = sadd.s32 0, 0
    %p30 = scmp.lt.s32.totalorder %s29, 0
    %s31 = scalar_select %p30, %s29, 0
    %p32 = scmp.lt.s32.totalorder %s31, 0
    %s33 = scalar_select %p32, %s31, 0
    %s34 = smul.addr %s33, 2
    %s35 = scalar_lea.vmem %s0, %s34
    %s36 = sadd.s32 0, 0
    %p37 = scmp.lt.s32.totalorder %s36, 0
    %s38 = scalar_select %p37, %s36, 0
    %p39 = scmp.eq.s32.totalorder 0, 0
    // Predicated region
    $region10: #{tpu_custom_call.1} parent=1 // pred_check
      %p40 = pneg %p39
    $region11: #{tpu_custom_call.1} parent=1 // pred_check_branch
      %42 = sbr.rel (%p40) target = $region13
    $region12: #{tpu_custom_call.1} parent=1 // pred_region
      %43 = vst [vmem:[#allocation2] sm:$0x1] 0.0
    $region13: #{tpu_custom_call.1} parent=1 // pred_fallthru
      _
    %v44 = vld [vmem:[%s35] sm:$0x3]
    %v45 = vld [vmem:[#allocation2] sm:$0x1]
    %vm46 = vcmask 1041408
    %v47 = vsel %vm46, %v44, 0.0
    %v48 = vrot.slane %v47, 4
    %v49 = vadd.f32 %v47, %v48
    %v50 = vrot.slane %v49, 2
    %v51 = vadd.f32 %v49, %v50
    %v52 = vrot.slane %v51, 1
    %v53 = vadd.f32 %v51, %v52
    %v54 = vadd.f32 %v45, %v53
    %55 = vst [vmem:[#allocation2] sm:$0x1] %v54
    // Predicated region
    $region14: #{tpu_custom_call.1} parent=1 // pred_check
      %p56 = pneg %p39
    $region15: #{tpu_custom_call.1} parent=1 // pred_check_branch
      %58 = sbr.rel (%p56) target = $region17
    $region16: #{tpu_custom_call.1} parent=1 // pred_region
      %v59 = vld [vmem:[#allocation2] sm:$0x1]
      %v60 = vmul.f32 %v59, 0.125
      %v61 = vld [vmem:[%s1] sm:$0xff]
      %v62 = vld [vmem:[%s1 + $0x8] sm:$0xff]
      %v63 = vld [vmem:[%s1 + $0x10] sm:$0xff]
      %v64 = vld [vmem:[%s1 + $0x18] sm:$0xff]
      %v65 = vld [vmem:[%s1 + $0x20] sm:$0xff]
      %v66 = vld [vmem:[%s1 + $0x28] sm:$0xff]
      %v67 = vld [vmem:[%s1 + $0x30] sm:$0xff]
      %v68 = vld [vmem:[%s1 + $0x38] sm:$0xff]
      %v69 = vld [vmem:[%s1 + $0x40] sm:$0xff]
      %v70 = vld [vmem:[%s1 + $0x48] sm:$0xff]
      %v71 = vld [vmem:[%s1 + $0x50] sm:$0xff]
      %v72 = vld [vmem:[%s1 + $0x58] sm:$0xff]
      %v73 = vld [vmem:[%s1 + $0x60] sm:$0xff]
      %v74 = vld [vmem:[%s1 + $0x68] sm:$0xff]
      %v75 = vld [vmem:[%s1 + $0x70] sm:$0xff]
      %v76 = vld [vmem:[%s1 + $0x78] sm:$0xff]
      %77 = vmatpush.msra.mxu0 %v76
      %78 = vmatpush.msra.mxu0 %v75
      %79 = vmatpush.msra.mxu0 %v74
      %80 = vmatpush.msra.mxu0 %v73
      %81 = vmatpush.msra.mxu0 %v72
      %82 = vmatpush.msra.mxu0 %v71
      %83 = vmatpush.msra.mxu0 %v70
      %84 = vmatpush.msra.mxu0 %v69
      %85 = vmatpush.msra.mxu0 %v68
      %86 = vmatpush.msra.mxu0 %v67
      %87 = vmatpush.msra.mxu0 %v66
      %88 = vmatpush.msra.mxu0 %v65
      %89 = vmatpush.msra.mxu0 %v64
      %90 = vmatpush.msra.mxu0 %v63
      %91 = vmatpush.msra.mxu0 %v62
      %92 = vmatpush.msra.mxu0 %v61
      %93 = vmatmul.f32.gmra.mxu0 %v60
      %v94 = vpop.f32.mrf.mxu0
      %v95 = vadd.f32 0.0, %v94
      %96 = vdwg.mxu0
      %vm97 = vcmask 253952
      %98 = vst.msk [vmem:[#allocation3] sm:$0x1] %vm97, %v95
    $region17: #{tpu_custom_call.1} parent=1 // pred_fallthru
      _
    // Predicated region
    $region18: #{tpu_custom_call.1} parent=1 // pred_check
      _
    $region19: #{tpu_custom_call.1} parent=1 // pred_check_branch
      %100 = sbr.rel (0) target = $region21
    $region20: #{tpu_custom_call.1} parent=1 // pred_region
      %102 = vsyncadd [#allocation4], 0
      %s104 = sshll.u32 [#allocation3], 4
      %s105 = int_to_ptr.vmem [resolvable:$true] %s104
      %s106 = sshll.u32 %s2, 4
      %s107 = int_to_ptr.hbm [resolvable:$true] %s106
      %109 = dma.vmem_to_hbm [thread:$0]  %s105, 16, %s107, [#allocation4]
    $region21: #{tpu_custom_call.1} parent=1 // pred_fallthru
      _
    // Predicated region
    $region22: #{tpu_custom_call.1} parent=1 // pred_check
      _
    $region23: #{tpu_custom_call.1} parent=1 // pred_check_branch
      %111 = sbr.rel (0) target = $region25
    $region24: #{tpu_custom_call.1} parent=1 // pred_region
      %113 = dma.done [#allocation4], 16
    $region25: #{tpu_custom_call.1} parent=1 // pred_fallthru
      _
    %114 = vsyncpa [#allocation4], 1

</llo_original>
